<compile_context>
chip_gen: v5e
topology: v5e:2x2
jax: 0.10.0
libtpu: 0.0.40
codegen_flags: <defaults>
</compile_context>

<pallas_src>
import jax
import jax.numpy as jnp
from typing import NamedTuple
from jax.experimental import pallas as pl
from jax.experimental.pallas import tpu as pltpu

_HIDDEN = 128
_LANE = 128
_SUBLANE = 8


def _round_up(x, m):
    return ((x + m - 1) // m) * m


def _cdiv(a, b):
    return -(-a // b)


def ppo_mlp_kernel(state_ref, w1_ref, b1_ref, w2_ref, b2_ref,
                   w3_ref, b3_ref, mean_ref):
    # One batch tile: three MXU matmuls (bf16 operands, f32 accumulation),
    # bias-add + ReLU on the VPU in f32, lane-dense (TB, 128) bf16 store.
    x = state_ref[...].astype(w1_ref.dtype)                             # f32 -> bf16 in-kernel
    h1 = jnp.dot(x, w1_ref[...], preferred_element_type=jnp.float32)
    h1 = jnp.maximum(h1 + b1_ref[...], 0.0)                             # (TB, H) f32
    h2 = jnp.dot(h1.astype(w2_ref.dtype), w2_ref[...],
                 preferred_element_type=jnp.float32)
    h2 = jnp.maximum(h2 + b2_ref[...], 0.0)                             # (TB, H) f32
    mean = jnp.dot(h2.astype(w3_ref.dtype), w3_ref[...],
                   preferred_element_type=jnp.float32)
    mean_ref[...] = (mean + b3_ref[...]).astype(mean_ref.dtype)         # (TB, 128) bf16


class PreppedParams(NamedTuple):
    w1: jax.Array   # (S, H)      bf16
    b1: jax.Array   # (1, H)      f32
    w2: jax.Array   # (H, H)      bf16
    b2: jax.Array   # (1, H)      f32
    w3: jax.Array   # (H, A_pad)  bf16  (lane-padded)
    b3: jax.Array   # (1, A_pad)  f32   (lane-padded)
    std: jax.Array  # (A,)        f32   (= exp(log_std), batch-independent)


def prepare_params(params):
    """One-time per-policy prep: bf16 casts, lane padding, std = exp(log_std)."""
    w1, b1, w2, b2, w3, b3, log_std = params
    A = w3.shape[1]
    A_pad = _round_up(A, _LANE)
    cdt = jnp.bfloat16
    return PreppedParams(
        w1=w1.astype(cdt),
        b1=b1.reshape(1, -1).astype(jnp.float32),
        w2=w2.astype(cdt),
        b2=b2.reshape(1, -1).astype(jnp.float32),
        w3=jnp.pad(w3, ((0, 0), (0, A_pad - A))).astype(cdt),
        b3=jnp.pad(b3.reshape(1, -1), ((0, 0), (0, A_pad - A))).astype(jnp.float32),
        std=jnp.exp(log_std).reshape(-1).astype(jnp.float32),
    )


def ppo_forward(state, pp: PreppedParams, *, max_tile=2048):
    """state: (B, state_dim) f32. Returns (mean (B, A) f32, std (A,) f32)."""
    B, S = state.shape
    H = pp.w1.shape[1]
    A_pad = pp.w3.shape[1]
    A = pp.std.shape[0]

    # Balanced batch tiling: never a mostly-padded last tile; >=2 (even) grid
    # steps when B is big enough so v7x's two TensorCores split the batch.
    n = max(1, _cdiv(B, max_tile))
    if B >= 2 * _SUBLANE:
        n = max(n, 2)
    if n > 1 and n % 2:
        n += 1
    TB = _round_up(_cdiv(B, n), _SUBLANE)
    B_pad = n * TB

    # State stays f32 (bf16 cast is in-kernel); pad only the few rows needed.
    state_p = state if B_pad == B else jnp.pad(state, ((0, B_pad - B), (0, 0)))

    flops = 2 * B_pad * (S * H + H * H + H * A_pad)
    bytes_accessed = (B_pad * S * 4                          # streamed f32 state
                      + (S * H + H * H + H * A_pad) * 2      # resident bf16 weights
                      + (2 * H + A_pad) * 4                  # f32 biases
                      + B_pad * A_pad * 2)                   # bf16 mean slab

    # Constant index_map => weights/biases resident in VMEM across grid steps.
    resident = lambda shape: pl.BlockSpec(shape, lambda i: (0, 0))

    mean_padded = pl.pallas_call(
        ppo_mlp_kernel,
        out_shape=jax.ShapeDtypeStruct((B_pad, A_pad), jnp.bfloat16),
        grid=(n,),
        in_specs=[
            pl.BlockSpec((TB, S), lambda i: (i, 0)),   # streamed state tile (f32)
            resident((S, H)),                          # W1 (in, out)
            resident((1, H)),                          # b1
            resident((H, H)),                          # W2
            resident((1, H)),                          # b2
            resident((H, A_pad)),                      # W3 (lane-padded)
            resident((1, A_pad)),                      # b3 (lane-padded)
        ],
        out_specs=pl.BlockSpec((TB, A_pad), lambda i: (i, 0)),
        compiler_params=pltpu.CompilerParams(
            dimension_semantics=("parallel",)),        # v7x: shard batch over 2 TCs
        cost_estimate=pl.CostEstimate(
            flops=flops, transcendentals=0, bytes_accessed=bytes_accessed),
    )(state_p, pp.w1, pp.b1, pp.w2, pp.b2, pp.w3, pp.b3)

    mean = mean_padded[:B, :A].astype(jnp.float32)
    return mean, pp.std


def init_params(key, state_dim, action_dim, hidden=_HIDDEN):
    """Deterministic synthetic init (shapes match PPOAgent.__init__)."""
    k1, k2, k3, k4, k5, k6 = jax.random.split(key, 6)
    w1 = jax.random.normal(k1, (state_dim, hidden), jnp.float32) * 0.05
    b1 = jax.random.normal(k2, (hidden,), jnp.float32) * 0.01
    w2 = jax.random.normal(k3, (hidden, hidden), jnp.float32) * 0.05
    b2 = jax.random.normal(k4, (hidden,), jnp.float32) * 0.01
    w3 = jax.random.normal(k5, (hidden, action_dim), jnp.float32) * 0.05
    b3 = jax.random.normal(k6, (action_dim,), jnp.float32) * 0.01
    log_std = jnp.zeros((action_dim,), jnp.float32)   # nn.Parameter(zeros)
    return (w1, b1, w2, b2, w3, b3, log_std)


def ppo_forward_ref(state, params, compute_dtype=jnp.bfloat16, round_output=False):
    """Pure-JAX reference (mirrors the kernel's bf16-operand / f32-accum path)."""
    w1, b1, w2, b2, w3, b3, log_std = params
    cd = compute_dtype
    h1 = jnp.maximum(
        jnp.dot(state.astype(cd), w1.astype(cd),
                preferred_element_type=jnp.float32) + b1.reshape(1, -1), 0.0)
    h2 = jnp.maximum(
        jnp.dot(h1.astype(cd), w2.astype(cd),
                preferred_element_type=jnp.float32) + b2.reshape(1, -1), 0.0)
    mean = jnp.dot(h2.astype(cd), w3.astype(cd),
                   preferred_element_type=jnp.float32) + b3.reshape(1, -1)
    if round_output:  # mirror the kernel's bf16 mean store
        mean = mean.astype(jnp.bfloat16).astype(jnp.float32)
    std = jnp.exp(log_std).reshape(-1)
    return mean, std


if __name__ == "__main__":
    key = jax.random.PRNGKey(0)
    k_state, k_params, k_big = jax.random.split(key, 3)

    batch, state_dim, action_dim = 2, 32, 4
    state = jax.random.normal(k_state, (batch, state_dim), jnp.float32)
    params = init_params(k_params, state_dim, action_dim)
    prepped = prepare_params(params)      # one-time weight prep (hoisted out of forward)

    fwd = jax.jit(ppo_forward)

    mean, std = fwd(state, prepped)
    jax.block_until_ready((mean, std))

    mean_ref_bf16, std_ref = ppo_forward_ref(state, params,
                                             compute_dtype=jnp.bfloat16,
                                             round_output=True)
    mean_ref_f32, _ = ppo_forward_ref(state, params, compute_dtype=jnp.float32)
    assert mean.shape == (batch, action_dim)
    assert std.shape == (action_dim,)
    assert jnp.allclose(mean, mean_ref_bf16, atol=1e-2, rtol=1e-2)
    assert jnp.allclose(mean, mean_ref_f32, atol=5e-2, rtol=5e-2)
    assert jnp.allclose(std, std_ref, atol=1e-6, rtol=1e-6)

    # Larger batch: exercises balanced tiling (n=2, TB=304, B_pad=608), the
    # resident-weight streaming, and the 2-TensorCore batch split on v7x.
    big_batch = 600
    big_state = jax.random.normal(k_big, (big_batch, state_dim), jnp.float32)
    big_mean, big_std = fwd(big_state, prepped)
    jax.block_until_ready((big_mean, big_std))
    big_ref, _ = ppo_forward_ref(big_state, params,
                                 compute_dtype=jnp.bfloat16, round_output=True)
    assert big_mean.shape == (big_batch, action_dim)
    assert big_std.shape == (action_dim,)
    assert jnp.allclose(big_mean, big_ref, atol=1e-2, rtol=1e-2)

    print("KERNEL_OK")
</pallas_src>

<mosaic_0001>
module attributes {stable_mosaic.version = 11 : i64} {
  func.func @ppo_mlp_kernel(%arg0: i32, %arg1: memref<8x32xf32, #tpu.memory_space<vmem>>, %arg2: memref<32x128xbf16, #tpu.memory_space<vmem>>, %arg3: memref<1x128xf32, #tpu.memory_space<vmem>>, %arg4: memref<128x128xbf16, #tpu.memory_space<vmem>>, %arg5: memref<1x128xf32, #tpu.memory_space<vmem>>, %arg6: memref<128x128xbf16, #tpu.memory_space<vmem>>, %arg7: memref<1x128xf32, #tpu.memory_space<vmem>>, %arg8: memref<8x128xbf16, #tpu.memory_space<vmem>>) attributes {dimension_semantics = [#tpu.dimension_semantics<parallel>], iteration_bounds = array<i64: 1>, scalar_prefetch = 0 : i64, scratch_operands = 0 : i64, tpu.core_type = #tpu.core_type<tc>, window_params = [{transform_indices = @transform_0, window_bounds = array<i64: 8, 32>}, {pipeline_mode = #tpu.pipeline_mode<synchronous>, transform_indices = @transform_1, window_bounds = array<i64: 32, 128>}, {pipeline_mode = #tpu.pipeline_mode<synchronous>, transform_indices = @transform_2, window_bounds = array<i64: 1, 128>}, {pipeline_mode = #tpu.pipeline_mode<synchronous>, transform_indices = @transform_3, window_bounds = array<i64: 128, 128>}, {pipeline_mode = #tpu.pipeline_mode<synchronous>, transform_indices = @transform_4, window_bounds = array<i64: 1, 128>}, {pipeline_mode = #tpu.pipeline_mode<synchronous>, transform_indices = @transform_5, window_bounds = array<i64: 128, 128>}, {pipeline_mode = #tpu.pipeline_mode<synchronous>, transform_indices = @transform_6, window_bounds = array<i64: 1, 128>}, {transform_indices = @transform_7, window_bounds = array<i64: 8, 128>}]} {
    %c0 = arith.constant 0 : index
    %c0_0 = arith.constant 0 : index
    %0 = vector.load %arg1[%c0, %c0_0] : memref<8x32xf32, #tpu.memory_space<vmem>>, vector<8x32xf32>
    %1 = arith.truncf %0 : vector<8x32xf32> to vector<8x32xbf16>
    %c0_1 = arith.constant 0 : index
    %c0_2 = arith.constant 0 : index
    %2 = vector.load %arg2[%c0_1, %c0_2] : memref<32x128xbf16, #tpu.memory_space<vmem>>, vector<32x128xbf16>
    %cst = arith.constant dense<0.000000e+00> : vector<8x128xf32>
    %3 = tpu.matmul %1, %2, %cst {dimension_numbers = #tpu.dot_dimension_numbers<[1], [0], [0], [1], [0, 0, 1, 1], [], []>} : vector<8x32xbf16>, vector<32x128xbf16>, vector<8x128xf32> -> vector<8x128xf32>
    %c0_3 = arith.constant 0 : index
    %c0_4 = arith.constant 0 : index
    %4 = vector.load %arg3[%c0_3, %c0_4] : memref<1x128xf32, #tpu.memory_space<vmem>>, vector<1x128xf32>
    %5 = vector.broadcast %4 : vector<1x128xf32> to vector<8x128xf32>
    %6 = arith.addf %3, %5 : vector<8x128xf32>
    %cst_5 = arith.constant 0.000000e+00 : f32
    %7 = vector.broadcast %cst_5 : f32 to vector<8x128xf32>
    %8 = arith.maximumf %6, %7 : vector<8x128xf32>
    %9 = arith.truncf %8 : vector<8x128xf32> to vector<8x128xbf16>
    %c0_6 = arith.constant 0 : index
    %c0_7 = arith.constant 0 : index
    %10 = vector.load %arg4[%c0_6, %c0_7] : memref<128x128xbf16, #tpu.memory_space<vmem>>, vector<128x128xbf16>
    %cst_8 = arith.constant dense<0.000000e+00> : vector<8x128xf32>
    %11 = tpu.matmul %9, %10, %cst_8 {dimension_numbers = #tpu.dot_dimension_numbers<[1], [0], [0], [1], [0, 0, 1, 1], [], []>} : vector<8x128xbf16>, vector<128x128xbf16>, vector<8x128xf32> -> vector<8x128xf32>
    %c0_9 = arith.constant 0 : index
    %c0_10 = arith.constant 0 : index
    %12 = vector.load %arg5[%c0_9, %c0_10] : memref<1x128xf32, #tpu.memory_space<vmem>>, vector<1x128xf32>
    %13 = vector.broadcast %12 : vector<1x128xf32> to vector<8x128xf32>
    %14 = arith.addf %11, %13 : vector<8x128xf32>
    %cst_11 = arith.constant 0.000000e+00 : f32
    %15 = vector.broadcast %cst_11 : f32 to vector<8x128xf32>
    %16 = arith.maximumf %14, %15 : vector<8x128xf32>
    %17 = arith.truncf %16 : vector<8x128xf32> to vector<8x128xbf16>
    %c0_12 = arith.constant 0 : index
    %c0_13 = arith.constant 0 : index
    %18 = vector.load %arg6[%c0_12, %c0_13] : memref<128x128xbf16, #tpu.memory_space<vmem>>, vector<128x128xbf16>
    %cst_14 = arith.constant dense<0.000000e+00> : vector<8x128xf32>
    %19 = tpu.matmul %17, %18, %cst_14 {dimension_numbers = #tpu.dot_dimension_numbers<[1], [0], [0], [1], [0, 0, 1, 1], [], []>} : vector<8x128xbf16>, vector<128x128xbf16>, vector<8x128xf32> -> vector<8x128xf32>
    %c0_15 = arith.constant 0 : index
    %c0_16 = arith.constant 0 : index
    %20 = vector.load %arg7[%c0_15, %c0_16] : memref<1x128xf32, #tpu.memory_space<vmem>>, vector<1x128xf32>
    %21 = vector.broadcast %20 : vector<1x128xf32> to vector<8x128xf32>
    %22 = arith.addf %19, %21 : vector<8x128xf32>
    %23 = arith.truncf %22 : vector<8x128xf32> to vector<8x128xbf16>
    %c0_17 = arith.constant 0 : index
    %c0_18 = arith.constant 0 : index
    %24 = vector.load %arg8[%c0_17, %c0_18] : memref<8x128xbf16, #tpu.memory_space<vmem>>, vector<8x128xbf16>
    tpu.vector_store %arg8[%c0_17, %c0_18], %23 {strides = array<i32>} : memref<8x128xbf16, #tpu.memory_space<vmem>>, vector<8x128xbf16>,
    return
  }
  func.func @transform_0(%arg0: i32) -> (i32, i32) {
    %c0_i32 = arith.constant 0 : i32
    %c0_i32_0 = arith.constant 0 : i32
    return %arg0, %c0_i32 : i32, i32
  }
  func.func @transform_1(%arg0: i32) -> (i32, i32) {
    %c0_i32 = arith.constant 0 : i32
    %c0_i32_0 = arith.constant 0 : i32
    %c0_i32_1 = arith.constant 0 : i32
    return %c0_i32, %c0_i32_0 : i32, i32
  }
  func.func @transform_2(%arg0: i32) -> (i32, i32) {
    %c0_i32 = arith.constant 0 : i32
    %c0_i32_0 = arith.constant 0 : i32
    %c0_i32_1 = arith.constant 0 : i32
    return %c0_i32, %c0_i32_0 : i32, i32
  }
  func.func @transform_3(%arg0: i32) -> (i32, i32) {
    %c0_i32 = arith.constant 0 : i32
    %c0_i32_0 = arith.constant 0 : i32
    %c0_i32_1 = arith.constant 0 : i32
    return %c0_i32, %c0_i32_0 : i32, i32
  }
  func.func @transform_4(%arg0: i32) -> (i32, i32) {
    %c0_i32 = arith.constant 0 : i32
    %c0_i32_0 = arith.constant 0 : i32
    %c0_i32_1 = arith.constant 0 : i32
    return %c0_i32, %c0_i32_0 : i32, i32
  }
  func.func @transform_5(%arg0: i32) -> (i32, i32) {
    %c0_i32 = arith.constant 0 : i32
    %c0_i32_0 = arith.constant 0 : i32
    %c0_i32_1 = arith.constant 0 : i32
    return %c0_i32, %c0_i32_0 : i32, i32
  }
  func.func @transform_6(%arg0: i32) -> (i32, i32) {
    %c0_i32 = arith.constant 0 : i32
    %c0_i32_0 = arith.constant 0 : i32
    %c0_i32_1 = arith.constant 0 : i32
    return %c0_i32, %c0_i32_0 : i32, i32
  }
  func.func @transform_7(%arg0: i32) -> (i32, i32) {
    %c0_i32 = arith.constant 0 : i32
    %c0_i32_0 = arith.constant 0 : i32
    return %arg0, %c0_i32 : i32, i32
  }
}

</mosaic_0001>

<llo_original>
// kernel: ppo_forward.1
$region0: #{ppo_forward.1}
  #allocation0 [shape = 'u32[]', space=smem, size = 0x4, offset = 0x4, fixed_abs, tag = 'smem constant byte address 0x4 - core index']
  #allocation1 [shape = 'u32[72,128]{1,0:T(1,128)}', space=vmem, size = 0x9000, scoped, tag = 'internal scratch']
  %s0 = inlined_call_operand.vmem [shape: f32[8,32], index: 0, kind: input, shape index: {}]
  %s1 = inlined_call_operand.hbm [shape: bf16[32,128], index: 1, kind: input, shape index: {}]
  %s2 = inlined_call_operand.vmem [shape: f32[1,128], index: 2, kind: input, shape index: {}]
  %s3 = inlined_call_operand.hbm [shape: bf16[128,128], index: 3, kind: input, shape index: {}]
  %s4 = inlined_call_operand.vmem [shape: f32[1,128], index: 4, kind: input, shape index: {}]
  %s5 = inlined_call_operand.hbm [shape: bf16[128,128], index: 5, kind: input, shape index: {}]
  %s6 = inlined_call_operand.vmem [shape: f32[1,128], index: 6, kind: input, shape index: {}]
  %s7 = inlined_call_operand.vmem [shape: bf16[8,128], index: 7, kind: output, shape index: {}]
  %s8 = sld [smem:[#allocation0]]
  $region50: #{ppo_forward.1} parent=0
    _
  %s10 = ssub.s32 1, %s8
  %s11 = scalar_select 0, %s10, %s8
  $region1: #{ppo_forward.1} parent=0
    #allocation2 [shape = 'u8[8192]{0}', space=vmem, size = 0x2000, scoped, tag = 'input window, operand 1, single buffered']
    #allocation3 [shape = 's32[1]{0}', space=sflag, size = 0x4, scoped, tag = 'scoped memory for ppo_forward.1']
    #allocation4 [shape = 'u8[32768]{0}', space=vmem, size = 0x8000, scoped, tag = 'input window, operand 3, single buffered']
    #allocation5 [shape = 's32[1]{0}', space=sflag, size = 0x4, scoped, tag = 'scoped memory for ppo_forward.1']
    #allocation6 [shape = 'u8[32768]{0}', space=vmem, size = 0x8000, scoped, tag = 'input window, operand 5, single buffered']
    %12 = vsyncpa [#allocation3], 0
    %13 = vsyncpa [#allocation5], 0
    // Predicated region
    $region2: #{ppo_forward.1} parent=1 // pred_check
      _
    $region3: #{ppo_forward.1} parent=1 // pred_check_branch
      %15 = sbr.rel (0) target = $region5
    $region4: #{ppo_forward.1} parent=1 // pred_region
      _
    $region5: #{ppo_forward.1} parent=1 // pred_fallthru
      _
    // Predicated region
    $region6: #{ppo_forward.1} parent=1 // pred_check
      _
    $region7: #{ppo_forward.1} parent=1 // pred_check_branch
      %17 = sbr.rel (0) target = $region9
    $region8: #{ppo_forward.1} parent=1 // pred_region
      %19 = vsyncadd [#allocation3], 0
      %s20 = sshll.u32 %s1, 4
      %s21 = int_to_ptr.hbm [resolvable:$true] %s20
      %s22 = sshll.u32 [#allocation2], 4
      %s23 = int_to_ptr.vmem [resolvable:$true] %s22
      %28 = dma.hbm_to_vmem [thread:$0]  %s21, 256, %s23, [#allocation3], 64, 64, 4
    $region9: #{ppo_forward.1} parent=1 // pred_fallthru
      _
    // Predicated region
    $region10: #{ppo_forward.1} parent=1 // pred_check
      _
    $region11: #{ppo_forward.1} parent=1 // pred_check_branch
      %30 = sbr.rel (0) target = $region13
    $region12: #{ppo_forward.1} parent=1 // pred_region
      _
    $region13: #{ppo_forward.1} parent=1 // pred_fallthru
      _
    // Predicated region
    $region14: #{ppo_forward.1} parent=1 // pred_check
      _
    $region15: #{ppo_forward.1} parent=1 // pred_check_branch
      %32 = sbr.rel (0) target = $region17
    $region16: #{ppo_forward.1} parent=1 // pred_region
      %34 = vsyncadd [#allocation5], 0
      %s35 = sshll.u32 %s3, 4
      %s36 = int_to_ptr.hbm [resolvable:$true] %s35
      %s37 = sshll.u32 [#allocation4], 4
      %s38 = int_to_ptr.vmem [resolvable:$true] %s37
      %43 = dma.hbm_to_vmem [thread:$0]  %s36, 1024, %s38, [#allocation5], 64, 64, 4
    $region17: #{ppo_forward.1} parent=1 // pred_fallthru
      _
    // Predicated region
    $region18: #{ppo_forward.1} parent=1 // pred_check
      _
    $region19: #{ppo_forward.1} parent=1 // pred_check_branch
      %45 = sbr.rel (0) target = $region21
    $region20: #{ppo_forward.1} parent=1 // pred_region
      _
    $region21: #{ppo_forward.1} parent=1 // pred_fallthru
      _
    // Predicated region
    $region22: #{ppo_forward.1} parent=1 // pred_check
      _
    $region23: #{ppo_forward.1} parent=1 // pred_check_branch
      %47 = sbr.rel (0) target = $region25
    $region24: #{ppo_forward.1} parent=1 // pred_region
      %49 = vsyncadd [#allocation5], 0
      %s50 = sshll.u32 %s5, 4
      %s51 = int_to_ptr.hbm [resolvable:$true] %s50
      %s52 = sshll.u32 [#allocation6], 4
      %s53 = int_to_ptr.vmem [resolvable:$true] %s52
      %58 = dma.hbm_to_vmem [thread:$0]  %s51, 1024, %s53, [#allocation5], 64, 64, 4
    $region25: #{ppo_forward.1} parent=1 // pred_fallthru
      _
    // Predicated region
    $region26: #{ppo_forward.1} parent=1 // pred_check
      _
    $region27: #{ppo_forward.1} parent=1 // pred_check_branch
      %60 = sbr.rel (0) target = $region29
    $region28: #{ppo_forward.1} parent=1 // pred_region
      _
    $region29: #{ppo_forward.1} parent=1 // pred_fallthru
      _
    // Predicated region
    $region30: #{ppo_forward.1} parent=1 // pred_check
      _
    $region31: #{ppo_forward.1} parent=1 // pred_check_branch
      %62 = sbr.rel (0) target = $region33
    $region32: #{ppo_forward.1} parent=1 // pred_region
      %64 = dma.done [#allocation3], 256
    $region33: #{ppo_forward.1} parent=1 // pred_fallthru
      _
    // Predicated region
    $region34: #{ppo_forward.1} parent=1 // pred_check
      _
    $region35: #{ppo_forward.1} parent=1 // pred_check_branch
      %66 = sbr.rel (0) target = $region37
    $region36: #{ppo_forward.1} parent=1 // pred_region
      %68 = dma.done [#allocation5], 1024
    $region37: #{ppo_forward.1} parent=1 // pred_fallthru
      _
    // Predicated region
    $region38: #{ppo_forward.1} parent=1 // pred_check
      _
    $region39: #{ppo_forward.1} parent=1 // pred_check_branch
      %70 = sbr.rel (0) target = $region41
    $region40: #{ppo_forward.1} parent=1 // pred_region
      %72 = dma.done [#allocation5], 1024
    $region41: #{ppo_forward.1} parent=1 // pred_fallthru
      _
    %v74 = vld [vmem:[%s0] sm:$0xff]
    %v75 = vpack.c.bf16 %v74, %v74
    %v76 = vld [vmem:[#allocation2] sm:$0xf]
    %v77 = vld [vmem:[#allocation2 + $0x4] sm:$0xf]
    %v78 = vld [vmem:[#allocation2 + $0x8] sm:$0xf]
    %v79 = vld [vmem:[#allocation2 + $0xc] sm:$0xf]
    %v80 = vld [vmem:[%s2] sm:$0x1]
    %v82 = vperm.slane %v80, 0
    %v88 = vunpack.c.l.b16 %v76
    %v89 = vunpack.c.l.b16 %v77
    %v90 = vunpack.c.l.b16 %v78
    %v91 = vunpack.c.l.b16 %v79
    %v92 = vpack.c.b16 %v89, %v88
    %v93 = vpack.c.b16 %v91, %v90
    %vm96 = vcmask 261120
    %v98 = vsel %vm96, %v75, 0
    %100 = vmatpush.bf16.msra.mxu0 0
    %101 = vmatpush.bf16.msra.mxu0 0
    %102 = vmatpush.bf16.msra.mxu0 0
    %103 = vmatpush.bf16.msra.mxu0 0
    %104 = vmatpush.bf16.msra.mxu0 0
    %105 = vmatpush.bf16.msra.mxu0 0
    %106 = vmatpush.bf16.msra.mxu0 %v93
    %107 = vmatpush.bf16.msra.mxu0 %v92
    %108 = vmatmul.bf16.gmra.mxu0 %v98
    %v109 = vpop.f32.mrf.mxu0
    %v110 = vadd.f32 %v82, %v109
    %v111 = vpop.f32.mrf.mxu0
    %112 = vdwg.mxu0
    %v113 = vmax.f32 %v110, 0.0
    %v114 = vpack.c.bf16 %v113, %v113
    %v115 = vld [vmem:[#allocation4] sm:$0xf]
    %v116 = vld [vmem:[#allocation4 + $0x4] sm:$0xf]
    %v117 = vld [vmem:[#allocation4 + $0x8] sm:$0xf]
    %v118 = vld [vmem:[#allocation4 + $0xc] sm:$0xf]
    %v119 = vld [vmem:[#allocation4 + $0x10] sm:$0xf]
    %v120 = vld [vmem:[#allocation4 + $0x14] sm:$0xf]
    %v121 = vld [vmem:[#allocation4 + $0x18] sm:$0xf]
    %v122 = vld [vmem:[#allocation4 + $0x1c] sm:$0xf]
    %v123 = vld [vmem:[#allocation4 + $0x20] sm:$0xf]
    %v124 = vld [vmem:[#allocation4 + $0x24] sm:$0xf]
    %v125 = vld [vmem:[#allocation4 + $0x28] sm:$0xf]
    %v126 = vld [vmem:[#allocation4 + $0x2c] sm:$0xf]
    %v127 = vld [vmem:[#allocation4 + $0x30] sm:$0xf]
    %v128 = vld [vmem:[#allocation4 + $0x34] sm:$0xf]
    %v129 = vld [vmem:[#allocation4 + $0x38] sm:$0xf]
    %v130 = vld [vmem:[#allocation4 + $0x3c] sm:$0xf]
    %v131 = vld [vmem:[%s4] sm:$0x1]
    %v133 = vperm.slane %v131, 0
    %v151 = vunpack.c.l.b16 %v115
    %v152 = vunpack.c.l.b16 %v116
    %v153 = vunpack.c.l.b16 %v117
    %v154 = vunpack.c.l.b16 %v118
    %v155 = vunpack.c.l.b16 %v119
    %v156 = vunpack.c.l.b16 %v120
    %v157 = vunpack.c.l.b16 %v121
    %v158 = vunpack.c.l.b16 %v122
    %v159 = vunpack.c.l.b16 %v123
    %v160 = vunpack.c.l.b16 %v124
    %v161 = vunpack.c.l.b16 %v125
    %v162 = vunpack.c.l.b16 %v126
    %v163 = vunpack.c.l.b16 %v127
    %v164 = vunpack.c.l.b16 %v128
    %v165 = vunpack.c.l.b16 %v129
    %v166 = vunpack.c.l.b16 %v130
    %v167 = vpack.c.b16 %v152, %v151
    %v168 = vpack.c.b16 %v154, %v153
    %v169 = vpack.c.b16 %v156, %v155
    %v170 = vpack.c.b16 %v158, %v157
    %v171 = vpack.c.b16 %v160, %v159
    %v172 = vpack.c.b16 %v162, %v161
    %v173 = vpack.c.b16 %v164, %v163
    %v174 = vpack.c.b16 %v166, %v165
    %183 = vmatpush.bf16.msra.mxu0 %v174
    %184 = vmatpush.bf16.msra.mxu0 %v173
    %185 = vmatpush.bf16.msra.mxu0 %v172
    %186 = vmatpush.bf16.msra.mxu0 %v171
    %187 = vmatpush.bf16.msra.mxu0 %v170
    %188 = vmatpush.bf16.msra.mxu0 %v169
    %189 = vmatpush.bf16.msra.mxu0 %v168
    %190 = vmatpush.bf16.msra.mxu0 %v167
    %191 = vmatmul.bf16.gmra.mxu0 %v114
    %v192 = vpop.f32.mrf.mxu0
    %v193 = vadd.f32 %v133, %v192
    %v194 = vpop.f32.mrf.mxu0
    %195 = vdwg.mxu0
    %v196 = vmax.f32 %v193, 0.0
    %v197 = vpack.c.bf16 %v196, %v196
    %v198 = vld [vmem:[#allocation6] sm:$0xf]
    %v199 = vld [vmem:[#allocation6 + $0x4] sm:$0xf]
    %v200 = vld [vmem:[#allocation6 + $0x8] sm:$0xf]
    %v201 = vld [vmem:[#allocation6 + $0xc] sm:$0xf]
    %v202 = vld [vmem:[#allocation6 + $0x10] sm:$0xf]
    %v203 = vld [vmem:[#allocation6 + $0x14] sm:$0xf]
    %v204 = vld [vmem:[#allocation6 + $0x18] sm:$0xf]
    %v205 = vld [vmem:[#allocation6 + $0x1c] sm:$0xf]
    %v206 = vld [vmem:[#allocation6 + $0x20] sm:$0xf]
    %v207 = vld [vmem:[#allocation6 + $0x24] sm:$0xf]
    %v208 = vld [vmem:[#allocation6 + $0x28] sm:$0xf]
    %v209 = vld [vmem:[#allocation6 + $0x2c] sm:$0xf]
    %v210 = vld [vmem:[#allocation6 + $0x30] sm:$0xf]
    %v211 = vld [vmem:[#allocation6 + $0x34] sm:$0xf]
    %v212 = vld [vmem:[#allocation6 + $0x38] sm:$0xf]
    %v213 = vld [vmem:[#allocation6 + $0x3c] sm:$0xf]
    %v214 = vld [vmem:[%s6] sm:$0x1]
    %v216 = vperm.slane %v214, 0
    %v234 = vunpack.c.l.b16 %v198
    %v235 = vunpack.c.l.b16 %v199
    %v236 = vunpack.c.l.b16 %v200
    %v237 = vunpack.c.l.b16 %v201
    %v238 = vunpack.c.l.b16 %v202
    %v239 = vunpack.c.l.b16 %v203
    %v240 = vunpack.c.l.b16 %v204
    %v241 = vunpack.c.l.b16 %v205
    %v242 = vunpack.c.l.b16 %v206
    %v243 = vunpack.c.l.b16 %v207
    %v244 = vunpack.c.l.b16 %v208
    %v245 = vunpack.c.l.b16 %v209
    %v246 = vunpack.c.l.b16 %v210
    %v247 = vunpack.c.l.b16 %v211
    %v248 = vunpack.c.l.b16 %v212
    %v249 = vunpack.c.l.b16 %v213
    %v250 = vpack.c.b16 %v235, %v234
    %v251 = vpack.c.b16 %v237, %v236
    %v252 = vpack.c.b16 %v239, %v238
    %v253 = vpack.c.b16 %v241, %v240
    %v254 = vpack.c.b16 %v243, %v242
    %v255 = vpack.c.b16 %v245, %v244
    %v256 = vpack.c.b16 %v247, %v246
    %v257 = vpack.c.b16 %v249, %v248
    %266 = vmatpush.bf16.msra.mxu0 %v257
    %267 = vmatpush.bf16.msra.mxu0 %v256
    %268 = vmatpush.bf16.msra.mxu0 %v255
    %269 = vmatpush.bf16.msra.mxu0 %v254
    %270 = vmatpush.bf16.msra.mxu0 %v253
    %271 = vmatpush.bf16.msra.mxu0 %v252
    %272 = vmatpush.bf16.msra.mxu0 %v251
    %273 = vmatpush.bf16.msra.mxu0 %v250
    %274 = vmatmul.bf16.gmra.mxu0 %v197
    %v275 = vpop.f32.mrf.mxu0
    %v276 = vadd.f32 %v216, %v275
    %v277 = vpop.f32.mrf.mxu0
    %278 = vdwg.mxu0
    %v279 = vpack.c.bf16 %v276, %v276
    %280 = vst [vmem:[%s7] sm:$0xf] %v279
    // Predicated region
    $region42: #{ppo_forward.1} parent=1 // pred_check
      _
    $region43: #{ppo_forward.1} parent=1 // pred_check_branch
      %282 = sbr.rel (0) target = $region45
    $region44: #{ppo_forward.1} parent=1 // pred_region
      _
    $region45: #{ppo_forward.1} parent=1 // pred_fallthru
      _
    // Predicated region
    $region46: #{ppo_forward.1} parent=1 // pred_check
      _
    $region47: #{ppo_forward.1} parent=1 // pred_check_branch
      %284 = sbr.rel (0) target = $region49
    $region48: #{ppo_forward.1} parent=1 // pred_region
      _
    $region49: #{ppo_forward.1} parent=1 // pred_fallthru
      _
    %285 = vsyncpa [#allocation3], 1
    %286 = vsyncpa [#allocation5], 1

</llo_original>
